<compile_context>
chip_gen: v6e
topology: v6e:2x2x1
jax: 0.10.0
libtpu: 0.0.40
codegen_flags: <defaults>
</compile_context>

<pallas_src>
import functools

import numpy as np
import jax
import jax.numpy as jnp
from jax.experimental import pallas as pl
from jax.experimental.pallas import tpu as pltpu


# --------------------------------------------------------------------------------------
# Pallas kernel: one grid step processes G images x TILE_N pixels of the selected dataset
# and writes lane-dense (1, 1, c, 128) partial sums for the loss and trace regularizer.
# --------------------------------------------------------------------------------------
def _dataset_loss_kernel(yp_ref, yt_ref, w_ref, eye_ref, cm_ref, loss_ref, reg_ref,
                         *, n_tiles, tile_n, last_valid, eps):
    yp = yp_ref[...]            # (G, c, T)  sigmoid preds incl. background
    yt = yt_ref[...]            # (G, c, T)  targets incl. bitwise-not background
    w = w_ref[...]              # (G, c, 1)  per-image positive-frequency weights
    eye = eye_ref[...]          # (1, c, c, 1)
    cm = cm_ref[...]            # (G, c, c, T)  CM[i, j] per pixel

    # column sums: denom[g, j, p] = sum_i CM[i, j]   (matches torch cm.sum(dim=1))
    denom = jnp.sum(cm, axis=1) + eps                        # (G, c, T) outer-axis adds
    # exact divide on purpose: approx reciprocal can push ypn across the clip-at-1
    # boundary and hit the -100 log clamp differently from the reference.
    inv = 1.0 / denom

    # per-pixel matvec: ypn[i] = sum_j CM[i, j] * yp[j] / colsum[j]
    scaled_yp = yp * inv                                     # (G, c, T)
    ypn = jnp.sum(cm * scaled_yp[:, None, :, :], axis=2)     # (G, c, T)
    ypn = jnp.clip(ypn, eps, 1.0)

    # BCELoss (reduction='none') with PyTorch's log clamp at -100
    log_p = jnp.maximum(jnp.log(ypn), -100.0)
    log_q = jnp.maximum(jnp.log(1.0 - ypn), -100.0)
    bce = -(yt * log_p + (1.0 - yt) * log_q)

    # fused class-frequency weighting: yt*bce*(1-w) + (1-yt)*bce*w == bce*(w + yt*(1-2w))
    weighted = bce * (w + yt * (1.0 - 2.0 * w))              # (G, c, T)

    if last_valid is not None:          # static: only compiled when the pixel dim is padded
        t = pl.program_id(1)
        lane = jax.lax.broadcasted_iota(jnp.int32, (1, 1, tile_n), 2)
        limit = jnp.where(t == n_tiles - 1, jnp.int32(last_valid), jnp.int32(tile_n))
        weighted = weighted * (lane < limit).astype(weighted.dtype)

    # trace regularizer: diag of column-normalized CM via a tiny eye mask (no sublane
    # extracts, no cm-sized iotas). Padded pixels/images have cm == 0 -> contribute 0.
    diag = jnp.sum(cm * eye, axis=1)                         # (G, c, T): cm[g, j, j, p]
    reg = diag * inv                                         # (G, c, T)

    # reduce lane dim T -> 128 with static lane-aligned slices (pure VPU adds, no
    # relayout), then sum over the G images of the block -> lane-dense (c, 128) partials.
    k = tile_n // 128
    loss_red = weighted[:, :, 0:128]
    reg_red = reg[:, :, 0:128]
    for q in range(1, k):
        loss_red = loss_red + weighted[:, :, q * 128:(q + 1) * 128]
        reg_red = reg_red + reg[:, :, q * 128:(q + 1) * 128]

    loss_ref[...] = jnp.sum(loss_red, axis=0)[None, None]    # (1, 1, c, 128)
    reg_ref[...] = jnp.sum(reg_red, axis=0)[None, None]      # (1, 1, c, 128)


def _choose_tile_n(n, target=1024):
    """Pick a lane-tile size: multiple of 128, prefer an exact divisor of n (no padding)."""
    target = max(128, (target // 128) * 128)
    if n <= target:
        return ((n + 127) // 128) * 128, 1
    best = 0
    for t in range(128, target + 1, 128):
        if n % t == 0:
            best = t
    if best:
        return best, n // best
    return target, (n + target - 1) // target        # last tile padded + masked in-kernel


def _vmem_block_bytes(g, c, tile_n):
    """Rough VMEM footprint (sublane-padded) of one pipelined step, double-buffered."""
    c8 = ((c + 7) // 8) * 8
    cm_blk = g * c * c8 * tile_n * 4
    v_blk = g * c8 * tile_n * 4
    w_blk = g * c8 * 128 * 4
    eye_blk = c * c8 * 128 * 4
    out_blk = c8 * 128 * 4
    return 2 * (cm_blk + 2 * v_blk + w_blk + eye_blk) + 4 * out_blk


def _dataset_loss(yp_d, yt_d, cm_d, eps, images_per_block=8, tile_n_target=1024):
    """yp_d, yt_d: (b, c, n) f32; cm_d: (b, c, c, n) f32 (all UNPADDED on channels).

    Returns (sum_loss, sum_trace) over the dataset; padding (batch / pixels) contributes 0.
    """
    b, c, n = yp_d.shape

    # per-image, per-channel positive-frequency weights over the FULL image (pre-tiling)
    w_d = jnp.sum(yt_d, axis=2, keepdims=True) * (1.0 / n)          # (b, c, 1)

    tile_n, n_tiles = _choose_tile_n(n, tile_n_target)
    n_pad = tile_n * n_tiles
    last_valid = None if n_pad == n else n - (n_tiles - 1) * tile_n

    g = max(1, min(images_per_block, b))
    while g > 1 and _vmem_block_bytes(g, c, tile_n) > (40 << 20):   # keep v7x (64 MiB) safe
        g //= 2
    num_blocks = pl.cdiv(b, g)
    b_pad = num_blocks * g

    pad_b, pad_n = b_pad - b, n_pad - n
    if pad_b or pad_n:
        yp_d = jnp.pad(yp_d, ((0, pad_b), (0, 0), (0, pad_n)))
        yt_d = jnp.pad(yt_d, ((0, pad_b), (0, 0), (0, pad_n)))
        cm_d = jnp.pad(cm_d, ((0, pad_b), (0, 0), (0, 0), (0, pad_n)))
        w_d = jnp.pad(w_d, ((0, pad_b), (0, 0), (0, 0)))

    eye = jnp.asarray(np.eye(c, dtype=np.float32).reshape(1, c, c, 1))

    est = _vmem_block_bytes(g, c, tile_n)
    vmem_limit = int(min(max(2 * est + (8 << 20), 32 << 20), 64 << 20))

    kernel = functools.partial(_dataset_loss_kernel, n_tiles=n_tiles, tile_n=tile_n,
                               last_valid=last_valid, eps=float(eps))
    loss_p, reg_p = pl.pallas_call(
        kernel,
        out_shape=(
            jax.ShapeDtypeStruct((num_blocks, n_tiles, c, 128), jnp.float32),
            jax.ShapeDtypeStruct((num_blocks, n_tiles, c, 128), jnp.float32),
        ),
        grid_spec=pltpu.PrefetchScalarGridSpec(
            num_scalar_prefetch=0,
            grid=(num_blocks, n_tiles),
            in_specs=[
                pl.BlockSpec((g, c, tile_n), lambda i, t: (i, 0, t)),
                pl.BlockSpec((g, c, tile_n), lambda i, t: (i, 0, t)),
                pl.BlockSpec((g, c, 1), lambda i, t: (i, 0, 0)),
                pl.BlockSpec((1, c, c, 1), lambda i, t: (0, 0, 0, 0)),
                pl.BlockSpec((g, c, c, tile_n), lambda i, t: (i, 0, 0, t)),
            ],
            out_specs=[
                pl.BlockSpec((1, 1, c, 128), lambda i, t: (i, t, 0, 0)),
                pl.BlockSpec((1, 1, c, 128), lambda i, t: (i, t, 0, 0)),
            ],
        ),
        compiler_params=pltpu.CompilerParams(
            dimension_semantics=("parallel", "parallel"),
            vmem_limit_bytes=vmem_limit,
        ),
    )(yp_d, yt_d, w_d, eye, cm_d)
    return jnp.sum(loss_p), jnp.sum(reg_p)


# --------------------------------------------------------------------------------------
# Plain-JAX glue: sigmoid + background channel construction, dataset (tag) selection,
# NCHW -> (b, c, h*w) reshapes, per-image weights, final scalar combination.
# --------------------------------------------------------------------------------------
def multi_dataset_cross_entropy(y_pred, cm_predictions, tag_np, y_true, *, alpha,
                                epsilon=1e-5, images_per_block=8, tile_n_target=1024):
    B, C, H, W = y_pred.shape
    c = C + 1
    n = H * W

    yp = jax.nn.sigmoid(y_pred)
    y_bg = jnp.clip(1.0 - jnp.max(yp, axis=1, keepdims=True), 0.0, 1.0)
    yp = jnp.concatenate([y_bg, yp], axis=1)                                   # (B, c, H, W)

    # torch: y_bg_true = ~torch.any(y_true, 1, keepdim=True).long()  (bitwise not -> -1/-2)
    y_bg_true = ~(jnp.any(y_true != 0, axis=1, keepdims=True).astype(jnp.int32))
    yt = jnp.concatenate(
        [y_bg_true.astype(jnp.float32), y_true.astype(jnp.float32)], axis=1)   # (B, c, H, W)

    yp = yp.reshape(B, c, n).astype(jnp.float32)
    yt = yt.reshape(B, c, n).astype(jnp.float32)

    total_loss = jnp.float32(0.0)
    total_reg = jnp.float32(0.0)
    tag_np = np.asarray(tag_np)
    for d_id, cm in cm_predictions:
        idx = np.nonzero(tag_np == d_id)[0]
        b = int(idx.shape[0])
        yp_d = jnp.take(yp, idx, axis=0)
        yt_d = jnp.take(yt, idx, axis=0)
        cm_d = cm.reshape(b, c, c, n).astype(jnp.float32)     # no channel padding
        loss_sum, reg_sum = _dataset_loss(yp_d, yt_d, cm_d, epsilon,
                                          images_per_block, tile_n_target)
        total_loss = total_loss + loss_sum / (b * n)
        total_reg = total_reg + reg_sum / (b * n)
    return total_loss + alpha * total_reg


# --------------------------------------------------------------------------------------
# Pure-JAX reference (mirrors the PyTorch code path 1:1, no padding) for validation.
# --------------------------------------------------------------------------------------
def reference_forward(y_pred, cm_predictions, tag_np, y_true, *, alpha, epsilon=1e-5):
    yp = jax.nn.sigmoid(y_pred)
    y_bg = jnp.clip(1.0 - jnp.max(yp, axis=1, keepdims=True), 0.0, 1.0)
    yp = jnp.concatenate([y_bg, yp], axis=1)
    y_bg_true = ~(jnp.any(y_true != 0, axis=1, keepdims=True).astype(jnp.int32))
    yt = jnp.concatenate([y_bg_true.astype(jnp.float32), y_true.astype(jnp.float32)], axis=1)

    loss = jnp.float32(0.0)
    reg = jnp.float32(0.0)
    for d_id, cm in cm_predictions:
        idx = np.nonzero(np.asarray(tag_np) == d_id)[0]
        yp_d = jnp.take(yp, idx, axis=0)
        yt_d = jnp.take(yt, idx, axis=0)
        b, c, h, w = yp_d.shape
        n = h * w
        ypv = yp_d.reshape(b, c, n).transpose(0, 2, 1).reshape(b * n, c, 1)
        cmv = cm.reshape(b, c * c, n).transpose(0, 2, 1).reshape(b * n, c, c)
        cmn = cmv / (cmv.sum(axis=1, keepdims=True) + epsilon)
        ypn = jnp.matmul(cmn, ypv).reshape(b, n, c).transpose(0, 2, 1)
        ypn = jnp.clip(ypn, epsilon, 1.0)
        ytd = yt_d.reshape(b, c, n)
        log_p = jnp.maximum(jnp.log(ypn), -100.0)
        log_q = jnp.maximum(jnp.log(1.0 - ypn), -100.0)
        bce = -(ytd * log_p + (1.0 - ytd) * log_q)
        w_ = ytd.sum(axis=2, keepdims=True) / n
        beta = 1.0 - w_
        weighted = ytd * bce * beta + (1.0 - ytd) * bce * w_
        loss = loss + weighted.sum() / (b * n)
        reg = reg + jnp.trace(cmn.sum(axis=0)) / (b * n)
    return loss + alpha * reg


if __name__ == "__main__":
    key = jax.random.PRNGKey(0)
    B, C, H, W = 4, 4, 16, 16          # y_pred: B x C x H x W (logits), y_true: B x C x H x W
    c = C + 1                          # +1 background channel -> CM is (C+1)^2 channels
    k1, k2, k3, k4 = jax.random.split(key, 4)

    y_pred = jax.random.normal(k1, (B, C, H, W), jnp.float32)
    y_true = (jax.random.uniform(k2, (B, C, H, W)) > 0.7).astype(jnp.float32)
    tag = np.array([0, 0, 1, 1], dtype=np.int32)

    # Deterministic "predicted confusion matrices", one per dataset, batch = #samples with that tag.
    cm0 = jax.random.uniform(k3, (2, c * c, H, W), jnp.float32, minval=0.05, maxval=1.0)
    cm1 = jax.random.uniform(k4, (2, c * c, H, W), jnp.float32, minval=0.05, maxval=1.0)
    cm_predictions = [(0, cm0), (1, cm1)]

    alpha = 0.5  # module default is None (would error in torch); pick a deterministic value

    out = multi_dataset_cross_entropy(y_pred, cm_predictions, tag, y_true,
                                      alpha=alpha, epsilon=1e-5)
    out = jax.block_until_ready(out)

    ref = reference_forward(y_pred, cm_predictions, tag, y_true, alpha=alpha, epsilon=1e-5)
    ref = jax.block_until_ready(ref)

    np.testing.assert_allclose(np.asarray(out), np.asarray(ref), rtol=1e-3, atol=1e-3)
    print("KERNEL_OK")
</pallas_src>

<mosaic_0001>
module attributes {stable_mosaic.version = 11 : i64} {
  func.func @_dataset_loss_kernel(%arg0: i32, %arg1: i32, %arg2: memref<2x5x256xf32, #tpu.memory_space<vmem>>, %arg3: memref<2x5x256xf32, #tpu.memory_space<vmem>>, %arg4: memref<2x5x1xf32, #tpu.memory_space<vmem>>, %arg5: memref<1x5x5x1xf32, #tpu.memory_space<vmem>>, %arg6: memref<2x5x5x256xf32, #tpu.memory_space<vmem>>, %arg7: memref<1x1x5x128xf32, #tpu.memory_space<vmem>>, %arg8: memref<1x1x5x128xf32, #tpu.memory_space<vmem>>) attributes {dimension_semantics = [#tpu.dimension_semantics<parallel>, #tpu.dimension_semantics<parallel>], iteration_bounds = array<i64: 1, 1>, scalar_prefetch = 0 : i64, scratch_operands = 0 : i64, tpu.core_type = #tpu.core_type<tc>, window_params = [{transform_indices = @transform_0, window_bounds = array<i64: 2, 5, 256>}, {transform_indices = @transform_1, window_bounds = array<i64: 2, 5, 256>}, {transform_indices = @transform_2, window_bounds = array<i64: 2, 5, 1>}, {pipeline_mode = #tpu.pipeline_mode<synchronous>, transform_indices = @transform_3, window_bounds = array<i64: 1, 5, 5, 1>}, {transform_indices = @transform_4, window_bounds = array<i64: 2, 5, 5, 256>}, {transform_indices = @transform_5, window_bounds = array<i64: 1, 1, 5, 128>}, {transform_indices = @transform_6, window_bounds = array<i64: 1, 1, 5, 128>}]} {
    %c0 = arith.constant 0 : index
    %c0_0 = arith.constant 0 : index
    %c0_1 = arith.constant 0 : index
    %0 = vector.load %arg2[%c0, %c0_0, %c0_1] : memref<2x5x256xf32, #tpu.memory_space<vmem>>, vector<2x5x256xf32>
    %c0_2 = arith.constant 0 : index
    %c0_3 = arith.constant 0 : index
    %c0_4 = arith.constant 0 : index
    %1 = vector.load %arg3[%c0_2, %c0_3, %c0_4] : memref<2x5x256xf32, #tpu.memory_space<vmem>>, vector<2x5x256xf32>
    %c0_5 = arith.constant 0 : index
    %c0_6 = arith.constant 0 : index
    %c0_7 = arith.constant 0 : index
    %2 = vector.load %arg4[%c0_5, %c0_6, %c0_7] : memref<2x5x1xf32, #tpu.memory_space<vmem>>, vector<2x5x1xf32>
    %c0_8 = arith.constant 0 : index
    %c0_9 = arith.constant 0 : index
    %c0_10 = arith.constant 0 : index
    %c0_11 = arith.constant 0 : index
    %3 = vector.load %arg5[%c0_8, %c0_9, %c0_10, %c0_11] : memref<1x5x5x1xf32, #tpu.memory_space<vmem>>, vector<1x5x5x1xf32>
    %c0_12 = arith.constant 0 : index
    %c0_13 = arith.constant 0 : index
    %c0_14 = arith.constant 0 : index
    %c0_15 = arith.constant 0 : index
    %4 = vector.load %arg6[%c0_12, %c0_13, %c0_14, %c0_15] : memref<2x5x5x256xf32, #tpu.memory_space<vmem>>, vector<2x5x5x256xf32>
    %cst = arith.constant dense<0.000000e+00> : vector<2x5x256xf32>
    %5 = vector.multi_reduction <add>, %4, %cst [1] : vector<2x5x5x256xf32> to vector<2x5x256xf32>
    %cst_16 = arith.constant 9.99999974E-6 : f32
    %6 = vector.broadcast %cst_16 : f32 to vector<2x5x256xf32>
    %7 = arith.addf %5, %6 : vector<2x5x256xf32>
    %cst_17 = arith.constant 1.000000e+00 : f32
    %8 = vector.broadcast %cst_17 : f32 to vector<2x5x256xf32>
    %9 = arith.divf %8, %7 : vector<2x5x256xf32>
    %10 = arith.mulf %0, %9 : vector<2x5x256xf32>
    %11 = vector.shape_cast %10 : vector<2x5x256xf32> to vector<2x1x5x256xf32>
    %12 = vector.broadcast %11 : vector<2x1x5x256xf32> to vector<2x5x5x256xf32>
    %13 = arith.mulf %4, %12 : vector<2x5x5x256xf32>
    %cst_18 = arith.constant dense<0.000000e+00> : vector<2x5x256xf32>
    %14 = vector.multi_reduction <add>, %13, %cst_18 [2] : vector<2x5x5x256xf32> to vector<2x5x256xf32>
    %cst_19 = arith.constant 9.99999974E-6 : f32
    %cst_20 = arith.constant 1.000000e+00 : f32
    %15 = vector.broadcast %cst_19 : f32 to vector<2x5x256xf32>
    %16 = arith.maximumf %15, %14 : vector<2x5x256xf32>
    %17 = vector.broadcast %cst_20 : f32 to vector<2x5x256xf32>
    %18 = arith.minimumf %17, %16 : vector<2x5x256xf32>
    %19 = math.log %18 : vector<2x5x256xf32>
    %cst_21 = arith.constant -1.000000e+02 : f32
    %20 = vector.broadcast %cst_21 : f32 to vector<2x5x256xf32>
    %21 = arith.maximumf %19, %20 : vector<2x5x256xf32>
    %cst_22 = arith.constant 1.000000e+00 : f32
    %22 = vector.broadcast %cst_22 : f32 to vector<2x5x256xf32>
    %23 = arith.subf %22, %18 : vector<2x5x256xf32>
    %24 = math.log %23 : vector<2x5x256xf32>
    %cst_23 = arith.constant -1.000000e+02 : f32
    %25 = vector.broadcast %cst_23 : f32 to vector<2x5x256xf32>
    %26 = arith.maximumf %24, %25 : vector<2x5x256xf32>
    %27 = arith.mulf %1, %21 : vector<2x5x256xf32>
    %cst_24 = arith.constant 1.000000e+00 : f32
    %28 = vector.broadcast %cst_24 : f32 to vector<2x5x256xf32>
    %29 = arith.subf %28, %1 : vector<2x5x256xf32>
    %30 = arith.mulf %29, %26 : vector<2x5x256xf32>
    %31 = arith.addf %27, %30 : vector<2x5x256xf32>
    %cst_25 = arith.constant 0.000000e+00 : f32
    %32 = vector.broadcast %cst_25 : f32 to vector<2x5x256xf32>
    %33 = arith.subf %32, %31 : vector<2x5x256xf32>
    %cst_26 = arith.constant 2.000000e+00 : f32
    %34 = vector.broadcast %cst_26 : f32 to vector<2x5x1xf32>
    %35 = arith.mulf %34, %2 : vector<2x5x1xf32>
    %cst_27 = arith.constant 1.000000e+00 : f32
    %36 = vector.broadcast %cst_27 : f32 to vector<2x5x1xf32>
    %37 = arith.subf %36, %35 : vector<2x5x1xf32>
    %38 = vector.broadcast %37 : vector<2x5x1xf32> to vector<2x5x256xf32>
    %39 = arith.mulf %1, %38 : vector<2x5x256xf32>
    %40 = vector.broadcast %2 : vector<2x5x1xf32> to vector<2x5x256xf32>
    %41 = arith.addf %40, %39 : vector<2x5x256xf32>
    %42 = arith.mulf %33, %41 : vector<2x5x256xf32>
    %43 = vector.broadcast %3 : vector<1x5x5x1xf32> to vector<2x5x5x256xf32>
    %44 = arith.mulf %4, %43 : vector<2x5x5x256xf32>
    %cst_28 = arith.constant dense<0.000000e+00> : vector<2x5x256xf32>
    %45 = vector.multi_reduction <add>, %44, %cst_28 [1] : vector<2x5x5x256xf32> to vector<2x5x256xf32>
    %46 = arith.mulf %45, %9 : vector<2x5x256xf32>
    %47 = vector.extract_strided_slice %42 {offsets = [0, 0, 0], sizes = [2, 5, 128], strides = [1, 1, 1]} : vector<2x5x256xf32> to vector<2x5x128xf32>
    %48 = vector.extract_strided_slice %46 {offsets = [0, 0, 0], sizes = [2, 5, 128], strides = [1, 1, 1]} : vector<2x5x256xf32> to vector<2x5x128xf32>
    %49 = vector.extract_strided_slice %42 {offsets = [0, 0, 128], sizes = [2, 5, 128], strides = [1, 1, 1]} : vector<2x5x256xf32> to vector<2x5x128xf32>
    %50 = arith.addf %47, %49 : vector<2x5x128xf32>
    %51 = vector.extract_strided_slice %46 {offsets = [0, 0, 128], sizes = [2, 5, 128], strides = [1, 1, 1]} : vector<2x5x256xf32> to vector<2x5x128xf32>
    %52 = arith.addf %48, %51 : vector<2x5x128xf32>
    %cst_29 = arith.constant dense<0.000000e+00> : vector<5x128xf32>
    %53 = vector.multi_reduction <add>, %50, %cst_29 [0] : vector<2x5x128xf32> to vector<5x128xf32>
    %54 = vector.shape_cast %53 : vector<5x128xf32> to vector<1x1x5x128xf32>
    %c0_30 = arith.constant 0 : index
    %c0_31 = arith.constant 0 : index
    %c0_32 = arith.constant 0 : index
    %c0_33 = arith.constant 0 : index
    %55 = vector.load %arg7[%c0_30, %c0_31, %c0_32, %c0_33] : memref<1x1x5x128xf32, #tpu.memory_space<vmem>>, vector<1x1x5x128xf32>
    tpu.vector_store %arg7[%c0_30, %c0_31, %c0_32, %c0_33], %54 {strides = array<i32>} : memref<1x1x5x128xf32, #tpu.memory_space<vmem>>, vector<1x1x5x128xf32>,
    %cst_34 = arith.constant dense<0.000000e+00> : vector<5x128xf32>
    %56 = vector.multi_reduction <add>, %52, %cst_34 [0] : vector<2x5x128xf32> to vector<5x128xf32>
    %57 = vector.shape_cast %56 : vector<5x128xf32> to vector<1x1x5x128xf32>
    %c0_35 = arith.constant 0 : index
    %c0_36 = arith.constant 0 : index
    %c0_37 = arith.constant 0 : index
    %c0_38 = arith.constant 0 : index
    %58 = vector.load %arg8[%c0_35, %c0_36, %c0_37, %c0_38] : memref<1x1x5x128xf32, #tpu.memory_space<vmem>>, vector<1x1x5x128xf32>
    tpu.vector_store %arg8[%c0_35, %c0_36, %c0_37, %c0_38], %57 {strides = array<i32>} : memref<1x1x5x128xf32, #tpu.memory_space<vmem>>, vector<1x1x5x128xf32>,
    return
  }
  func.func @transform_0(%arg0: i32, %arg1: i32) -> (i32, i32, i32) {
    %c0_i32 = arith.constant 0 : i32
    %c0_i32_0 = arith.constant 0 : i32
    return %arg0, %c0_i32, %arg1 : i32, i32, i32
  }
  func.func @transform_1(%arg0: i32, %arg1: i32) -> (i32, i32, i32) {
    %c0_i32 = arith.constant 0 : i32
    %c0_i32_0 = arith.constant 0 : i32
    return %arg0, %c0_i32, %arg1 : i32, i32, i32
  }
  func.func @transform_2(%arg0: i32, %arg1: i32) -> (i32, i32, i32) {
    %c0_i32 = arith.constant 0 : i32
    %c0_i32_0 = arith.constant 0 : i32
    %c0_i32_1 = arith.constant 0 : i32
    return %arg0, %c0_i32, %c0_i32_0 : i32, i32, i32
  }
  func.func @transform_3(%arg0: i32, %arg1: i32) -> (i32, i32, i32, i32) {
    %c0_i32 = arith.constant 0 : i32
    %c0_i32_0 = arith.constant 0 : i32
    %c0_i32_1 = arith.constant 0 : i32
    %c0_i32_2 = arith.constant 0 : i32
    %c0_i32_3 = arith.constant 0 : i32
    return %c0_i32, %c0_i32_0, %c0_i32_1, %c0_i32_2 : i32, i32, i32, i32
  }
  func.func @transform_4(%arg0: i32, %arg1: i32) -> (i32, i32, i32, i32) {
    %c0_i32 = arith.constant 0 : i32
    %c0_i32_0 = arith.constant 0 : i32
    %c0_i32_1 = arith.constant 0 : i32
    return %arg0, %c0_i32, %c0_i32_0, %arg1 : i32, i32, i32, i32
  }
  func.func @transform_5(%arg0: i32, %arg1: i32) -> (i32, i32, i32, i32) {
    %c0_i32 = arith.constant 0 : i32
    %c0_i32_0 = arith.constant 0 : i32
    %c0_i32_1 = arith.constant 0 : i32
    return %arg0, %arg1, %c0_i32, %c0_i32_0 : i32, i32, i32, i32
  }
  func.func @transform_6(%arg0: i32, %arg1: i32) -> (i32, i32, i32, i32) {
    %c0_i32 = arith.constant 0 : i32
    %c0_i32_0 = arith.constant 0 : i32
    %c0_i32_1 = arith.constant 0 : i32
    return %arg0, %arg1, %c0_i32, %c0_i32_0 : i32, i32, i32, i32
  }
}

</mosaic_0001>

<llo_original>
// kernel: tpu_custom_call.1
$region0: #{tpu_custom_call.1}
  #allocation0 [shape = 'u32[]', space=smem, size = 0x4, offset = 0x4, fixed_abs, tag = 'smem constant byte address 0x4 - core index']
  #allocation1 [shape = 'u32[144,128]{1,0:T(1,128)}', space=vmem, size = 0x12000, scoped, tag = 'internal scratch']
  %s0 = inlined_call_operand.vmem [shape: f32[2,5,256], index: 0, kind: input, shape index: {}]
  %s1 = inlined_call_operand.vmem [shape: f32[2,5,256], index: 1, kind: input, shape index: {}]
  %s2 = inlined_call_operand.vmem [shape: f32[2,5,1], index: 2, kind: input, shape index: {}]
  %s3 = inlined_call_operand.vmem [shape: f32[1,5,5,1], index: 3, kind: input, shape index: {}]
  %s4 = inlined_call_operand.vmem [shape: f32[2,5,5,256], index: 4, kind: input, shape index: {}]
  %s5 = inlined_call_operand.vmem [shape: f32[1,1,5,128], index: 5, kind: output, shape index: {0}]
  %s6 = inlined_call_operand.vmem [shape: f32[1,1,5,128], index: 6, kind: output, shape index: {1}]
  %7 = xla_tuple %s5, %s6
  %s8 = sld [smem:[#allocation0]]
  $region38: #{tpu_custom_call.1} parent=0
    _
  %s10 = ssub.s32 1, %s8
  %s11 = scalar_select 0, %s10, %s8
  // Predicated region
  $region2: #{tpu_custom_call.1} parent=0 // pred_check
    _
  $region3: #{tpu_custom_call.1} parent=0 // pred_check_branch
    %13 = sbr.rel (0) target = $region5
  $region4: #{tpu_custom_call.1} parent=0 // pred_region
    _
  $region5: #{tpu_custom_call.1} parent=0 // pred_fallthru
    _
  // Predicated region
  $region6: #{tpu_custom_call.1} parent=0 // pred_check
    _
  $region7: #{tpu_custom_call.1} parent=0 // pred_check_branch
    %15 = sbr.rel (0) target = $region9
  $region8: #{tpu_custom_call.1} parent=0 // pred_region
    _
  $region9: #{tpu_custom_call.1} parent=0 // pred_fallthru
    _
  // Predicated region
  $region10: #{tpu_custom_call.1} parent=0 // pred_check
    _
  $region11: #{tpu_custom_call.1} parent=0 // pred_check_branch
    %17 = sbr.rel (0) target = $region13
  $region12: #{tpu_custom_call.1} parent=0 // pred_region
    _
  $region13: #{tpu_custom_call.1} parent=0 // pred_fallthru
    _
  // Predicated region
  $region14: #{tpu_custom_call.1} parent=0 // pred_check
    _
  $region15: #{tpu_custom_call.1} parent=0 // pred_check_branch
    %19 = sbr.rel (0) target = $region17
  $region16: #{tpu_custom_call.1} parent=0 // pred_region
    _
  $region17: #{tpu_custom_call.1} parent=0 // pred_fallthru
    _
  // Predicated region
  $region18: #{tpu_custom_call.1} parent=0 // pred_check
    _
  $region19: #{tpu_custom_call.1} parent=0 // pred_check_branch
    %21 = sbr.rel (0) target = $region21
  $region20: #{tpu_custom_call.1} parent=0 // pred_region
    _
  $region21: #{tpu_custom_call.1} parent=0 // pred_fallthru
    _
  %v22 = vld [vmem:[%s0] sm:$0x1f]
  %v23 = vld [vmem:[%s0 + $0x8] sm:$0x1f]
  %v24 = vld [vmem:[%s0 + $0x10] sm:$0x1f]
  %v25 = vld [vmem:[%s0 + $0x18] sm:$0x1f]
  %v26 = vld [vmem:[%s1] sm:$0x1f]
  %v27 = vld [vmem:[%s1 + $0x8] sm:$0x1f]
  %v28 = vld [vmem:[%s1 + $0x10] sm:$0x1f]
  %v29 = vld [vmem:[%s1 + $0x18] sm:$0x1f]
  %v30 = vld [vmem:[%s2] sm:$0x1f]
  %v31 = vld [vmem:[%s2 + $0x8] sm:$0x1f]
  %v32 = vld [vmem:[%s3] sm:$0x1f]
  %v33 = vld [vmem:[%s3 + $0x8] sm:$0x1f]
  %v34 = vld [vmem:[%s3 + $0x10] sm:$0x1f]
  %v35 = vld [vmem:[%s3 + $0x18] sm:$0x1f]
  %v36 = vld [vmem:[%s3 + $0x20] sm:$0x1f]
  %v37 = vld [vmem:[%s4] sm:$0x1f]
  %v38 = vld [vmem:[%s4 + $0x8] sm:$0x1f]
  %v39 = vld [vmem:[%s4 + $0x10] sm:$0x1f]
  %v40 = vld [vmem:[%s4 + $0x18] sm:$0x1f]
  %v41 = vld [vmem:[%s4 + $0x20] sm:$0x1f]
  %v42 = vld [vmem:[%s4 + $0x28] sm:$0x1f]
  %v43 = vld [vmem:[%s4 + $0x30] sm:$0x1f]
  %v44 = vld [vmem:[%s4 + $0x38] sm:$0x1f]
  %v45 = vld [vmem:[%s4 + $0x40] sm:$0x1f]
  %v46 = vld [vmem:[%s4 + $0x48] sm:$0x1f]
  %v47 = vld [vmem:[%s4 + $0x50] sm:$0x1f]
  %v48 = vld [vmem:[%s4 + $0x58] sm:$0x1f]
  %v49 = vld [vmem:[%s4 + $0x60] sm:$0x1f]
  %v50 = vld [vmem:[%s4 + $0x68] sm:$0x1f]
  %v51 = vld [vmem:[%s4 + $0x70] sm:$0x1f]
  %v52 = vld [vmem:[%s4 + $0x78] sm:$0x1f]
  %v53 = vld [vmem:[%s4 + $0x80] sm:$0x1f]
  %v54 = vld [vmem:[%s4 + $0x88] sm:$0x1f]
  %v55 = vld [vmem:[%s4 + $0x90] sm:$0x1f]
  %v56 = vld [vmem:[%s4 + $0x98] sm:$0x1f]
  %vm57 = vcmask 1044480
  %v58 = vsel %vm57, %v37, 0.0
  %v59 = vsel %vm57, %v39, 0.0
  %v60 = vadd.f32 %v58, %v59
  %v61 = vsel %vm57, %v41, 0.0
  %v62 = vadd.f32 %v60, %v61
  %v63 = vsel %vm57, %v43, 0.0
  %v64 = vadd.f32 %v62, %v63
  %v65 = vsel %vm57, %v45, 0.0
  %v66 = vadd.f32 %v64, %v65
  %v67 = vsel %vm57, %v38, 0.0
  %v68 = vsel %vm57, %v40, 0.0
  %v69 = vadd.f32 %v67, %v68
  %v70 = vsel %vm57, %v42, 0.0
  %v71 = vadd.f32 %v69, %v70
  %v72 = vsel %vm57, %v44, 0.0
  %v73 = vadd.f32 %v71, %v72
  %v74 = vsel %vm57, %v46, 0.0
  %v75 = vadd.f32 %v73, %v74
  %v76 = vsel %vm57, %v47, 0.0
  %v77 = vsel %vm57, %v49, 0.0
  %v78 = vadd.f32 %v76, %v77
  %v79 = vsel %vm57, %v51, 0.0
  %v80 = vadd.f32 %v78, %v79
  %v81 = vsel %vm57, %v53, 0.0
  %v82 = vadd.f32 %v80, %v81
  %v83 = vsel %vm57, %v55, 0.0
  %v84 = vadd.f32 %v82, %v83
  %v85 = vsel %vm57, %v48, 0.0
  %v86 = vsel %vm57, %v50, 0.0
  %v87 = vadd.f32 %v85, %v86
  %v88 = vsel %vm57, %v52, 0.0
  %v89 = vadd.f32 %v87, %v88
  %v90 = vsel %vm57, %v54, 0.0
  %v91 = vadd.f32 %v89, %v90
  %v92 = vsel %vm57, %v56, 0.0
  %v93 = vadd.f32 %v91, %v92
  %v94 = vadd.f32 %v66, 1e-05
  %v95 = vadd.f32 %v75, 1e-05
  %v96 = vadd.f32 %v84, 1e-05
  %v97 = vadd.f32 %v93, 1e-05
  %v98 = vrcp.pop %v94
  %v99 = vmul.f32 1.0, %v98
  %v100 = vrcp.pop %v95
  %v101 = vmul.f32 1.0, %v100
  %v102 = vrcp.pop %v96
  %v103 = vmul.f32 1.0, %v102
  %v104 = vrcp.pop %v97
  %v105 = vmul.f32 1.0, %v104
  %v106 = vmul.f32 %v22, %v99
  %v107 = vmul.f32 %v23, %v101
  %v108 = vmul.f32 %v24, %v103
  %v109 = vmul.f32 %v25, %v105
  %v110 = vmul.f32 %v37, %v106
  %v111 = vmul.f32 %v38, %v107
  %v112 = vmul.f32 %v39, %v106
  %v113 = vmul.f32 %v40, %v107
  %v114 = vmul.f32 %v41, %v106
  %v115 = vmul.f32 %v42, %v107
  %v116 = vmul.f32 %v43, %v106
  %v117 = vmul.f32 %v44, %v107
  %v118 = vmul.f32 %v45, %v106
  %v119 = vmul.f32 %v46, %v107
  %v120 = vmul.f32 %v47, %v108
  %v121 = vmul.f32 %v48, %v109
  %v122 = vmul.f32 %v49, %v108
  %v123 = vmul.f32 %v50, %v109
  %v124 = vmul.f32 %v51, %v108
  %v125 = vmul.f32 %v52, %v109
  %v126 = vmul.f32 %v53, %v108
  %v127 = vmul.f32 %v54, %v109
  %v128 = vmul.f32 %v55, %v108
  %v129 = vmul.f32 %v56, %v109
  %v130 = vsel %vm57, %v110, 0.0
  %v131 = vrot.slane %v130, 4
  %v132 = vadd.f32 %v130, %v131
  %v133 = vrot.slane %v132, 2
  %v134 = vadd.f32 %v132, %v133
  %v135 = vrot.slane %v134, 1
  %v136 = vadd.f32 %v134, %v135
  %v137 = vsel %vm57, %v111, 0.0
  %v138 = vrot.slane %v137, 4
  %v139 = vadd.f32 %v137, %v138
  %v140 = vrot.slane %v139, 2
  %v141 = vadd.f32 %v139, %v140
  %v142 = vrot.slane %v141, 1
  %v143 = vadd.f32 %v141, %v142
  %v144 = vsel %vm57, %v112, 0.0
  %v145 = vrot.slane %v144, 4
  %v146 = vadd.f32 %v144, %v145
  %v147 = vrot.slane %v146, 2
  %v148 = vadd.f32 %v146, %v147
  %v149 = vrot.slane %v148, 1
  %v150 = vadd.f32 %v148, %v149
  %v151 = vsel %vm57, %v113, 0.0
  %v152 = vrot.slane %v151, 4
  %v153 = vadd.f32 %v151, %v152
  %v154 = vrot.slane %v153, 2
  %v155 = vadd.f32 %v153, %v154
  %v156 = vrot.slane %v155, 1
  %v157 = vadd.f32 %v155, %v156
  %v158 = vsel %vm57, %v114, 0.0
  %v159 = vrot.slane %v158, 4
  %v160 = vadd.f32 %v158, %v159
  %v161 = vrot.slane %v160, 2
  %v162 = vadd.f32 %v160, %v161
  %v163 = vrot.slane %v162, 1
  %v164 = vadd.f32 %v162, %v163
  %v165 = vsel %vm57, %v115, 0.0
  %v166 = vrot.slane %v165, 4
  %v167 = vadd.f32 %v165, %v166
  %v168 = vrot.slane %v167, 2
  %v169 = vadd.f32 %v167, %v168
  %v170 = vrot.slane %v169, 1
  %v171 = vadd.f32 %v169, %v170
  %v172 = vsel %vm57, %v116, 0.0
  %v173 = vrot.slane %v172, 4
  %v174 = vadd.f32 %v172, %v173
  %v175 = vrot.slane %v174, 2
  %v176 = vadd.f32 %v174, %v175
  %v177 = vrot.slane %v176, 1
  %v178 = vadd.f32 %v176, %v177
  %v179 = vsel %vm57, %v117, 0.0
  %v180 = vrot.slane %v179, 4
  %v181 = vadd.f32 %v179, %v180
  %v182 = vrot.slane %v181, 2
  %v183 = vadd.f32 %v181, %v182
  %v184 = vrot.slane %v183, 1
  %v185 = vadd.f32 %v183, %v184
  %v186 = vsel %vm57, %v118, 0.0
  %v187 = vrot.slane %v186, 4
  %v188 = vadd.f32 %v186, %v187
  %v189 = vrot.slane %v188, 2
  %v190 = vadd.f32 %v188, %v189
  %v191 = vrot.slane %v190, 1
  %v192 = vadd.f32 %v190, %v191
  %v193 = vsel %vm57, %v119, 0.0
  %v194 = vrot.slane %v193, 4
  %v195 = vadd.f32 %v193, %v194
  %v196 = vrot.slane %v195, 2
  %v197 = vadd.f32 %v195, %v196
  %v198 = vrot.slane %v197, 1
  %v199 = vadd.f32 %v197, %v198
  %v200 = vsel %vm57, %v120, 0.0
  %v201 = vrot.slane %v200, 4
  %v202 = vadd.f32 %v200, %v201
  %v203 = vrot.slane %v202, 2
  %v204 = vadd.f32 %v202, %v203
  %v205 = vrot.slane %v204, 1
  %v206 = vadd.f32 %v204, %v205
  %v207 = vsel %vm57, %v121, 0.0
  %v208 = vrot.slane %v207, 4
  %v209 = vadd.f32 %v207, %v208
  %v210 = vrot.slane %v209, 2
  %v211 = vadd.f32 %v209, %v210
  %v212 = vrot.slane %v211, 1
  %v213 = vadd.f32 %v211, %v212
  %v214 = vsel %vm57, %v122, 0.0
  %v215 = vrot.slane %v214, 4
  %v216 = vadd.f32 %v214, %v215
  %v217 = vrot.slane %v216, 2
  %v218 = vadd.f32 %v216, %v217
  %v219 = vrot.slane %v218, 1
  %v220 = vadd.f32 %v218, %v219
  %v221 = vsel %vm57, %v123, 0.0
  %v222 = vrot.slane %v221, 4
  %v223 = vadd.f32 %v221, %v222
  %v224 = vrot.slane %v223, 2
  %v225 = vadd.f32 %v223, %v224
  %v226 = vrot.slane %v225, 1
  %v227 = vadd.f32 %v225, %v226
  %v228 = vsel %vm57, %v124, 0.0
  %v229 = vrot.slane %v228, 4
  %v230 = vadd.f32 %v228, %v229
  %v231 = vrot.slane %v230, 2
  %v232 = vadd.f32 %v230, %v231
  %v233 = vrot.slane %v232, 1
  %v234 = vadd.f32 %v232, %v233
  %v235 = vsel %vm57, %v125, 0.0
  %v236 = vrot.slane %v235, 4
  %v237 = vadd.f32 %v235, %v236
  %v238 = vrot.slane %v237, 2
  %v239 = vadd.f32 %v237, %v238
  %v240 = vrot.slane %v239, 1
  %v241 = vadd.f32 %v239, %v240
  %v242 = vsel %vm57, %v126, 0.0
  %v243 = vrot.slane %v242, 4
  %v244 = vadd.f32 %v242, %v243
  %v245 = vrot.slane %v244, 2
  %v246 = vadd.f32 %v244, %v245
  %v247 = vrot.slane %v246, 1
  %v248 = vadd.f32 %v246, %v247
  %v249 = vsel %vm57, %v127, 0.0
  %v250 = vrot.slane %v249, 4
  %v251 = vadd.f32 %v249, %v250
  %v252 = vrot.slane %v251, 2
  %v253 = vadd.f32 %v251, %v252
  %v254 = vrot.slane %v253, 1
  %v255 = vadd.f32 %v253, %v254
  %v256 = vsel %vm57, %v128, 0.0
  %v257 = vrot.slane %v256, 4
  %v258 = vadd.f32 %v256, %v257
  %v259 = vrot.slane %v258, 2
  %v260 = vadd.f32 %v258, %v259
  %v261 = vrot.slane %v260, 1
  %v262 = vadd.f32 %v260, %v261
  %v263 = vsel %vm57, %v129, 0.0
  %v264 = vrot.slane %v263, 4
  %v265 = vadd.f32 %v263, %v264
  %v266 = vrot.slane %v265, 2
  %v267 = vadd.f32 %v265, %v266
  %v268 = vrot.slane %v267, 1
  %v269 = vadd.f32 %v267, %v268
  %v270 = vmax.f32 %v136, 1e-05
  %v271 = vmax.f32 %v143, 1e-05
  %v272 = vmax.f32 %v150, 1e-05
  %v273 = vmax.f32 %v157, 1e-05
  %v274 = vmax.f32 %v164, 1e-05
  %v275 = vmax.f32 %v171, 1e-05
  %v276 = vmax.f32 %v178, 1e-05
  %v277 = vmax.f32 %v185, 1e-05
  %v278 = vmax.f32 %v192, 1e-05
  %v279 = vmax.f32 %v199, 1e-05
  %v280 = vmax.f32 %v206, 1e-05
  %v281 = vmax.f32 %v213, 1e-05
  %v282 = vmax.f32 %v220, 1e-05
  %v283 = vmax.f32 %v227, 1e-05
  %v284 = vmax.f32 %v234, 1e-05
  %v285 = vmax.f32 %v241, 1e-05
  %v286 = vmax.f32 %v248, 1e-05
  %v287 = vmax.f32 %v255, 1e-05
  %v288 = vmax.f32 %v262, 1e-05
  %v289 = vmax.f32 %v269, 1e-05
  %v290 = vmin.f32 %v270, 1.0
  %v291 = vmin.f32 %v271, 1.0
  %v292 = vmin.f32 %v272, 1.0
  %v293 = vmin.f32 %v273, 1.0
  %v294 = vmin.f32 %v274, 1.0
  %v295 = vmin.f32 %v275, 1.0
  %v296 = vmin.f32 %v276, 1.0
  %v297 = vmin.f32 %v277, 1.0
  %v298 = vmin.f32 %v278, 1.0
  %v299 = vmin.f32 %v279, 1.0
  %v300 = vmin.f32 %v280, 1.0
  %v301 = vmin.f32 %v281, 1.0
  %v302 = vmin.f32 %v282, 1.0
  %v303 = vmin.f32 %v283, 1.0
  %v304 = vmin.f32 %v284, 1.0
  %v305 = vmin.f32 %v285, 1.0
  %v306 = vmin.f32 %v286, 1.0
  %v307 = vmin.f32 %v287, 1.0
  %v308 = vmin.f32 %v288, 1.0
  %v309 = vmin.f32 %v289, 1.0
  %v310 = vlog2.pop %v290
  %v311 = vmul.f32 %v310, 0.6931472
  %v312 = vlog2.pop %v291
  %v313 = vmul.f32 %v312, 0.6931472
  %v314 = vlog2.pop %v292
  %v315 = vmul.f32 %v314, 0.6931472
  %v316 = vlog2.pop %v293
  %v317 = vmul.f32 %v316, 0.6931472
  %v318 = vlog2.pop %v294
  %v319 = vmul.f32 %v318, 0.6931472
  %v320 = vlog2.pop %v295
  %v321 = vmul.f32 %v320, 0.6931472
  %v322 = vlog2.pop %v296
  %v323 = vmul.f32 %v322, 0.6931472
  %v324 = vlog2.pop %v297
  %v325 = vmul.f32 %v324, 0.6931472
  %v326 = vlog2.pop %v298
  %v327 = vmul.f32 %v326, 0.6931472
  %v328 = vlog2.pop %v299
  %v329 = vmul.f32 %v328, 0.6931472
  %v330 = vlog2.pop %v300
  %v331 = vmul.f32 %v330, 0.6931472
  %v332 = vlog2.pop %v301
  %v333 = vmul.f32 %v332, 0.6931472
  %v334 = vlog2.pop %v302
  %v335 = vmul.f32 %v334, 0.6931472
  %v336 = vlog2.pop %v303
  %v337 = vmul.f32 %v336, 0.6931472
  %v338 = vlog2.pop %v304
  %v339 = vmul.f32 %v338, 0.6931472
  %v340 = vlog2.pop %v305
  %v341 = vmul.f32 %v340, 0.6931472
  %v342 = vlog2.pop %v306
  %v343 = vmul.f32 %v342, 0.6931472
  %v344 = vlog2.pop %v307
  %v345 = vmul.f32 %v344, 0.6931472
  %v346 = vlog2.pop %v308
  %v347 = vmul.f32 %v346, 0.6931472
  %v348 = vlog2.pop %v309
  %v349 = vmul.f32 %v348, 0.6931472
  %v350 = vmax.f32 %v311, -100.0
  %v351 = vmax.f32 %v313, -100.0
  %v352 = vmax.f32 %v315, -100.0
  %v353 = vmax.f32 %v317, -100.0
  %v354 = vmax.f32 %v319, -100.0
  %v355 = vmax.f32 %v321, -100.0
  %v356 = vmax.f32 %v323, -100.0
  %v357 = vmax.f32 %v325, -100.0
  %v358 = vmax.f32 %v327, -100.0
  %v359 = vmax.f32 %v329, -100.0
  %v360 = vmax.f32 %v331, -100.0
  %v361 = vmax.f32 %v333, -100.0
  %v362 = vmax.f32 %v335, -100.0
  %v363 = vmax.f32 %v337, -100.0
  %v364 = vmax.f32 %v339, -100.0
  %v365 = vmax.f32 %v341, -100.0
  %v366 = vmax.f32 %v343, -100.0
  %v367 = vmax.f32 %v345, -100.0
  %v368 = vmax.f32 %v347, -100.0
  %v369 = vmax.f32 %v349, -100.0
  %v370 = vsub.f32 1.0, %v290
  %v371 = vsub.f32 1.0, %v291
  %v372 = vsub.f32 1.0, %v292
  %v373 = vsub.f32 1.0, %v293
  %v374 = vsub.f32 1.0, %v294
  %v375 = vsub.f32 1.0, %v295
  %v376 = vsub.f32 1.0, %v296
  %v377 = vsub.f32 1.0, %v297
  %v378 = vsub.f32 1.0, %v298
  %v379 = vsub.f32 1.0, %v299
  %v380 = vsub.f32 1.0, %v300
  %v381 = vsub.f32 1.0, %v301
  %v382 = vsub.f32 1.0, %v302
  %v383 = vsub.f32 1.0, %v303
  %v384 = vsub.f32 1.0, %v304
  %v385 = vsub.f32 1.0, %v305
  %v386 = vsub.f32 1.0, %v306
  %v387 = vsub.f32 1.0, %v307
  %v388 = vsub.f32 1.0, %v308
  %v389 = vsub.f32 1.0, %v309
  %v390 = vlog2.pop %v370
  %v391 = vmul.f32 %v390, 0.6931472
  %v392 = vlog2.pop %v371
  %v393 = vmul.f32 %v392, 0.6931472
  %v394 = vlog2.pop %v372
  %v395 = vmul.f32 %v394, 0.6931472
  %v396 = vlog2.pop %v373
  %v397 = vmul.f32 %v396, 0.6931472
  %v398 = vlog2.pop %v374
  %v399 = vmul.f32 %v398, 0.6931472
  %v400 = vlog2.pop %v375
  %v401 = vmul.f32 %v400, 0.6931472
  %v402 = vlog2.pop %v376
  %v403 = vmul.f32 %v402, 0.6931472
  %v404 = vlog2.pop %v377
  %v405 = vmul.f32 %v404, 0.6931472
  %v406 = vlog2.pop %v378
  %v407 = vmul.f32 %v406, 0.6931472
  %v408 = vlog2.pop %v379
  %v409 = vmul.f32 %v408, 0.6931472
  %v410 = vlog2.pop %v380
  %v411 = vmul.f32 %v410, 0.6931472
  %v412 = vlog2.pop %v381
  %v413 = vmul.f32 %v412, 0.6931472
  %v414 = vlog2.pop %v382
  %v415 = vmul.f32 %v414, 0.6931472
  %v416 = vlog2.pop %v383
  %v417 = vmul.f32 %v416, 0.6931472
  %v418 = vlog2.pop %v384
  %v419 = vmul.f32 %v418, 0.6931472
  %v420 = vlog2.pop %v385
  %v421 = vmul.f32 %v420, 0.6931472
  %v422 = vlog2.pop %v386
  %v423 = vmul.f32 %v422, 0.6931472
  %v424 = vlog2.pop %v387
  %v425 = vmul.f32 %v424, 0.6931472
  %v426 = vlog2.pop %v388
  %v427 = vmul.f32 %v426, 0.6931472
  %v428 = vlog2.pop %v389
  %v429 = vmul.f32 %v428, 0.6931472
  %v430 = vmax.f32 %v391, -100.0
  %v431 = vmax.f32 %v393, -100.0
  %v432 = vmax.f32 %v395, -100.0
  %v433 = vmax.f32 %v397, -100.0
  %v434 = vmax.f32 %v399, -100.0
  %v435 = vmax.f32 %v401, -100.0
  %v436 = vmax.f32 %v403, -100.0
  %v437 = vmax.f32 %v405, -100.0
  %v438 = vmax.f32 %v407, -100.0
  %v439 = vmax.f32 %v409, -100.0
  %v440 = vmax.f32 %v411, -100.0
  %v441 = vmax.f32 %v413, -100.0
  %v442 = vmax.f32 %v415, -100.0
  %v443 = vmax.f32 %v417, -100.0
  %v444 = vmax.f32 %v419, -100.0
  %v445 = vmax.f32 %v421, -100.0
  %v446 = vmax.f32 %v423, -100.0
  %v447 = vmax.f32 %v425, -100.0
  %v448 = vmax.f32 %v427, -100.0
  %v449 = vmax.f32 %v429, -100.0
  %vm470 = vcmask 1041409
  %v471 = vsel %vm470, %v352, %v350
  %vm472 = vcmask 1042434
  %v473 = vsel %vm472, %v354, %v471
  %vm474 = vcmask 1043459
  %v475 = vsel %vm474, %v356, %v473
  %vm476 = vcmask 1044484
  %v477 = vsel %vm476, %v358, %v475
  %v478 = vsel %vm470, %v353, %v351
  %v479 = vsel %vm472, %v355, %v478
  %v480 = vsel %vm474, %v357, %v479
  %v481 = vsel %vm476, %v359, %v480
  %v482 = vsel %vm470, %v362, %v360
  %v483 = vsel %vm472, %v364, %v482
  %v484 = vsel %vm474, %v366, %v483
  %v485 = vsel %vm476, %v368, %v484
  %v486 = vsel %vm470, %v363, %v361
  %v487 = vsel %vm472, %v365, %v486
  %v488 = vsel %vm474, %v367, %v487
  %v489 = vsel %vm476, %v369, %v488
  %v494 = vmul.f32 %v26, %v477
  %v495 = vmul.f32 %v27, %v481
  %v496 = vmul.f32 %v28, %v485
  %v497 = vmul.f32 %v29, %v489
  %v498 = vsub.f32 1.0, %v26
  %v499 = vsub.f32 1.0, %v27
  %v500 = vsub.f32 1.0, %v28
  %v501 = vsub.f32 1.0, %v29
  %v522 = vsel %vm470, %v432, %v430
  %v523 = vsel %vm472, %v434, %v522
  %v524 = vsel %vm474, %v436, %v523
  %v525 = vsel %vm476, %v438, %v524
  %v526 = vsel %vm470, %v433, %v431
  %v527 = vsel %vm472, %v435, %v526
  %v528 = vsel %vm474, %v437, %v527
  %v529 = vsel %vm476, %v439, %v528
  %v530 = vsel %vm470, %v442, %v440
  %v531 = vsel %vm472, %v444, %v530
  %v532 = vsel %vm474, %v446, %v531
  %v533 = vsel %vm476, %v448, %v532
  %v534 = vsel %vm470, %v443, %v441
  %v535 = vsel %vm472, %v445, %v534
  %v536 = vsel %vm474, %v447, %v535
  %v537 = vsel %vm476, %v449, %v536
  %v542 = vmul.f32 %v498, %v525
  %v543 = vmul.f32 %v499, %v529
  %v544 = vmul.f32 %v500, %v533
  %v545 = vmul.f32 %v501, %v537
  %v546 = vadd.f32 %v494, %v542
  %v547 = vadd.f32 %v495, %v543
  %v548 = vadd.f32 %v496, %v544
  %v549 = vadd.f32 %v497, %v545
  %v550 = vsub.f32 0.0, %v546
  %v551 = vsub.f32 0.0, %v547
  %v552 = vsub.f32 0.0, %v548
  %v553 = vsub.f32 0.0, %v549
  %v554 = vmul.f32 %v30, 2.0
  %v555 = vmul.f32 %v31, 2.0
  %v556 = vsub.f32 1.0, %v554
  %v557 = vsub.f32 1.0, %v555
  %559 = vset.pattern.permute.xlu0 0
  %560 = vperm.xlu0 %559, %v556
  %v561 = vpop.permute.xlu0 %560
  %564 = vset.pattern.permute.xlu0 0
  %565 = vperm.xlu0 %564, %v557
  %v566 = vpop.permute.xlu0 %565
  %v568 = vmul.f32 %v26, %v561
  %v569 = vmul.f32 %v27, %v561
  %v570 = vmul.f32 %v28, %v566
  %v571 = vmul.f32 %v29, %v566
  %573 = vset.pattern.permute.xlu0 0
  %574 = vperm.xlu0 %573, %v30
  %v575 = vpop.permute.xlu0 %574
  %578 = vset.pattern.permute.xlu0 0
  %579 = vperm.xlu0 %578, %v31
  %v580 = vpop.permute.xlu0 %579
  %v582 = vadd.f32 %v575, %v568
  %v583 = vadd.f32 %v575, %v569
  %v584 = vadd.f32 %v580, %v570
  %v585 = vadd.f32 %v580, %v571
  %v586 = vmul.f32 %v550, %v582
  %v587 = vmul.f32 %v551, %v583
  %v588 = vmul.f32 %v552, %v584
  %v589 = vmul.f32 %v553, %v585
  %591 = vset.pattern.permute.xlu0 0
  %592 = vperm.xlu0 %591, %v32
  %v593 = vpop.permute.xlu0 %592
  %596 = vset.pattern.permute.xlu0 0
  %597 = vperm.xlu0 %596, %v33
  %v598 = vpop.permute.xlu0 %597
  %601 = vset.pattern.permute.xlu0 0
  %602 = vperm.xlu0 %601, %v34
  %v603 = vpop.permute.xlu0 %602
  %606 = vset.pattern.permute.xlu0 0
  %607 = vperm.xlu0 %606, %v35
  %v608 = vpop.permute.xlu0 %607
  %611 = vset.pattern.permute.xlu0 0
  %612 = vperm.xlu0 %611, %v36
  %v613 = vpop.permute.xlu0 %612
  %v615 = vmul.f32 %v37, %v593
  %v616 = vmul.f32 %v38, %v593
  %v617 = vmul.f32 %v39, %v598
  %v618 = vmul.f32 %v40, %v598
  %v619 = vmul.f32 %v41, %v603
  %v620 = vmul.f32 %v42, %v603
  %v621 = vmul.f32 %v43, %v608
  %v622 = vmul.f32 %v44, %v608
  %v623 = vmul.f32 %v45, %v613
  %v624 = vmul.f32 %v46, %v613
  %v625 = vmul.f32 %v47, %v593
  %v626 = vmul.f32 %v48, %v593
  %v627 = vmul.f32 %v49, %v598
  %v628 = vmul.f32 %v50, %v598
  %v629 = vmul.f32 %v51, %v603
  %v630 = vmul.f32 %v52, %v603
  %v631 = vmul.f32 %v53, %v608
  %v632 = vmul.f32 %v54, %v608
  %v633 = vmul.f32 %v55, %v613
  %v634 = vmul.f32 %v56, %v613
  %v635 = vsel %vm57, %v615, 0.0
  %v636 = vsel %vm57, %v617, 0.0
  %v637 = vadd.f32 %v635, %v636
  %v638 = vsel %vm57, %v619, 0.0
  %v639 = vadd.f32 %v637, %v638
  %v640 = vsel %vm57, %v621, 0.0
  %v641 = vadd.f32 %v639, %v640
  %v642 = vsel %vm57, %v623, 0.0
  %v643 = vadd.f32 %v641, %v642
  %v644 = vsel %vm57, %v616, 0.0
  %v645 = vsel %vm57, %v618, 0.0
  %v646 = vadd.f32 %v644, %v645
  %v647 = vsel %vm57, %v620, 0.0
  %v648 = vadd.f32 %v646, %v647
  %v649 = vsel %vm57, %v622, 0.0
  %v650 = vadd.f32 %v648, %v649
  %v651 = vsel %vm57, %v624, 0.0
  %v652 = vadd.f32 %v650, %v651
  %v653 = vsel %vm57, %v625, 0.0
  %v654 = vsel %vm57, %v627, 0.0
  %v655 = vadd.f32 %v653, %v654
  %v656 = vsel %vm57, %v629, 0.0
  %v657 = vadd.f32 %v655, %v656
  %v658 = vsel %vm57, %v631, 0.0
  %v659 = vadd.f32 %v657, %v658
  %v660 = vsel %vm57, %v633, 0.0
  %v661 = vadd.f32 %v659, %v660
  %v662 = vsel %vm57, %v626, 0.0
  %v663 = vsel %vm57, %v628, 0.0
  %v664 = vadd.f32 %v662, %v663
  %v665 = vsel %vm57, %v630, 0.0
  %v666 = vadd.f32 %v664, %v665
  %v667 = vsel %vm57, %v632, 0.0
  %v668 = vadd.f32 %v666, %v667
  %v669 = vsel %vm57, %v634, 0.0
  %v670 = vadd.f32 %v668, %v669
  %v671 = vmul.f32 %v643, %v99
  %v672 = vmul.f32 %v652, %v101
  %v673 = vmul.f32 %v661, %v103
  %v674 = vmul.f32 %v670, %v105
  %v675 = vadd.f32 %v586, %v587
  %v676 = vadd.f32 %v588, %v589
  %v677 = vadd.f32 %v671, %v672
  %v678 = vadd.f32 %v673, %v674
  %v679 = vsel %vm57, %v675, 0.0
  %v680 = vsel %vm57, %v676, 0.0
  %v681 = vadd.f32 %v679, %v680
  %682 = vst [vmem:[%s5] sm:$0x1f] %v681
  %v683 = vsel %vm57, %v677, 0.0
  %v684 = vsel %vm57, %v678, 0.0
  %v685 = vadd.f32 %v683, %v684
  %686 = vst [vmem:[%s6] sm:$0x1f] %v685
  // Predicated region
  $region22: #{tpu_custom_call.1} parent=0 // pred_check
    _
  $region23: #{tpu_custom_call.1} parent=0 // pred_check_branch
    %688 = sbr.rel (0) target = $region25
  $region24: #{tpu_custom_call.1} parent=0 // pred_region
    _
  $region25: #{tpu_custom_call.1} parent=0 // pred_fallthru
    _
  // Predicated region
  $region26: #{tpu_custom_call.1} parent=0 // pred_check
    _
  $region27: #{tpu_custom_call.1} parent=0 // pred_check_branch
    %690 = sbr.rel (0) target = $region29
  $region28: #{tpu_custom_call.1} parent=0 // pred_region
    _
  $region29: #{tpu_custom_call.1} parent=0 // pred_fallthru
    _
  // Predicated region
  $region30: #{tpu_custom_call.1} parent=0 // pred_check
    _
  $region31: #{tpu_custom_call.1} parent=0 // pred_check_branch
    %692 = sbr.rel (0) target = $region33
  $region32: #{tpu_custom_call.1} parent=0 // pred_region
    _
  $region33: #{tpu_custom_call.1} parent=0 // pred_fallthru
    _
  // Predicated region
  $region34: #{tpu_custom_call.1} parent=0 // pred_check
    _
  $region35: #{tpu_custom_call.1} parent=0 // pred_check_branch
    %694 = sbr.rel (0) target = $region37
  $region36: #{tpu_custom_call.1} parent=0 // pred_region
    _
  $region37: #{tpu_custom_call.1} parent=0 // pred_fallthru
    _

</llo_original>
